<compile_context>
chip_gen: v7x
topology: tpu7x:2x2x1
jax: 0.10.0
libtpu: 0.0.40
codegen_flags: <defaults>
</compile_context>

<pallas_src>
import jax
import jax.numpy as jnp
from jax import lax
from jax.experimental import pallas as pl
from jax.experimental.pallas import tpu as pltpu


def _round_up(x, m):
    return ((x + m - 1) // m) * m


def _normalize_dtype(x):
    x = jnp.asarray(x)
    if x.dtype == jnp.float32 or x.dtype == jnp.bfloat16:
        return x
    return x.astype(jnp.float32)


def _make_kernel(n_valid, n_pad):
    """n_valid: number of real rows; n_pad: padded row count (both static)."""
    has_pad = n_pad != n_valid

    def kernel(margin_ref,                        # (1,) f32 SMEM (scalar prefetch)
               p1i_ref, p2i_ref,                  # (TILE, D) anchor rows
               p1j_ref, p2j_ref,                  # (TILE, D) negative rows
               omax_ref, osum_ref,                # (TILE, 1) per-anchor outputs
               dpm_sc, sq1_sc, max_sc, sum_sc):   # (TILE, 1) f32 scratch
        i_blk = pl.program_id(0)
        j_blk = pl.program_id(1)
        nj = pl.num_programs(1)
        tile_i = p1i_ref.shape[0]
        tile_j = p1j_ref.shape[0]

        # ---- per-i-tile init: cache anchor-row quantities, zero accumulators
        @pl.when(j_blk == 0)
        def _init():
            p1_i = p1i_ref[...].astype(jnp.float32)
            p2_i = p2i_ref[...].astype(jnp.float32)
            diff = p1_i - p2_i
            # dist_ap + margin, fused once per anchor tile.
            dpm_sc[...] = (jnp.sum(diff * diff, axis=-1, keepdims=True)
                           + margin_ref[0])
            sq1_sc[...] = jnp.sum(p1_i * p1_i, axis=-1, keepdims=True)
            max_sc[...] = jnp.zeros_like(max_sc)
            sum_sc[...] = jnp.zeros_like(sum_sc)

        p1_i = p1i_ref[...]                       # native dtype (f32 or bf16)
        p1_j = p1j_ref[...]
        p2_j = p2j_ref[...]

        # Gram matrices on the MXU, contracting the feature dim of both
        # operands directly (no transpose of the j-tiles), f32 accumulation.
        dn = (((1,), (1,)), ((), ()))
        g11 = lax.dot_general(p1_i, p1_j, dn, preferred_element_type=jnp.float32)
        g12 = lax.dot_general(p1_i, p2_j, dn, preferred_element_type=jnp.float32)

        p1_j_f = p1_j.astype(jnp.float32)
        p2_j_f = p2_j.astype(jnp.float32)
        sq1_j = jnp.sum(p1_j_f * p1_j_f, axis=-1)[None, :]   # (1, TILE_J)
        sq2_j = jnp.sum(p2_j_f * p2_j_f, axis=-1)[None, :]   # (1, TILE_J)

        sq_i = sq1_sc[...]        # (TILE_I, 1)  cached ||pair1_i||^2
        dist_pm = dpm_sc[...]     # (TILE_I, 1)  cached dist_ap + margin

        # Squared distances; clamp tiny negatives from f32 cancellation.
        d1 = jnp.maximum(sq_i + sq1_j - 2.0 * g11, 0.0)
        d2 = jnp.maximum(sq_i + sq2_j - 2.0 * g12, 0.0)

        loss1 = jnp.maximum(dist_pm - d1, 0.0)
        loss2 = jnp.maximum(dist_pm - d2, 0.0)

        # Validity: exclude the global diagonal (j == i) and, only when the
        # batch was padded (static), the padded columns.
        row_g = i_blk * tile_i + lax.broadcasted_iota(
            jnp.int32, (tile_i, tile_j), 0)
        col_g = j_blk * tile_j + lax.broadcasted_iota(
            jnp.int32, (tile_i, tile_j), 1)
        valid = row_g != col_g
        if has_pad:
            valid = valid & (col_g < n_valid)

        m1 = jnp.where(valid, loss1, 0.0)
        m2 = jnp.where(valid, loss2, 0.0)

        # Per-anchor hardest negative (running max) and running sum.
        tile_max = jnp.max(jnp.maximum(m1, m2), axis=1, keepdims=True)
        max_sc[...] = jnp.maximum(max_sc[...], tile_max)
        sum_sc[...] = sum_sc[...] + jnp.sum(m1 + m2, axis=1, keepdims=True)

        # ---- finalize: emit per-anchor results for this i-tile
        @pl.when(j_blk == nj - 1)
        def _fin():
            omax_ref[...] = max_sc[...]    # already floored at 0 (init == 0)
            osum_ref[...] = sum_sc[...]

    return kernel


def pair_triplet_loss(pair1, pair2, margin, *, tile=256):
    """Returns (sub_loss, all_loss) matching PairTripletLoss.forward."""
    pair1 = _normalize_dtype(pair1)
    pair2 = _normalize_dtype(pair2)
    if pair1.dtype != pair2.dtype:
        pair1 = pair1.astype(jnp.float32)
        pair2 = pair2.astype(jnp.float32)

    n, d = pair1.shape

    # Tile: multiple of 8 sublanes, capped at `tile`. 256 keeps the live block
    # set (a handful of (256,256) f32 Gram/loss tiles + input tiles) well under
    # the 32 MiB scoped-VMEM limit and v7x's 64 MiB physical VMEM.
    tile = _round_up(max(tile, 8), 8)
    blk = min(tile, _round_up(n, 8))
    n_pad = _round_up(n, blk)
    if n_pad != n:
        pad = n_pad - n
        pair1 = jnp.pad(pair1, ((0, pad), (0, 0)))
        pair2 = jnp.pad(pair2, ((0, pad), (0, 0)))
    num_blk = n_pad // blk

    margin_arr = jnp.asarray([margin], dtype=jnp.float32)

    grid_spec = pltpu.PrefetchScalarGridSpec(
        num_scalar_prefetch=1,                   # margin lives in SMEM
        grid=(num_blk, num_blk),                 # (anchor tiles, negative tiles)
        in_specs=[
            pl.BlockSpec((blk, d), lambda i, j, m: (i, 0)),   # pair1[i-tile]
            pl.BlockSpec((blk, d), lambda i, j, m: (i, 0)),   # pair2[i-tile]
            pl.BlockSpec((blk, d), lambda i, j, m: (j, 0)),   # pair1[j-tile]
            pl.BlockSpec((blk, d), lambda i, j, m: (j, 0)),   # pair2[j-tile]
        ],
        out_specs=(
            pl.BlockSpec((blk, 1), lambda i, j, m: (i, 0)),   # per-anchor max
            pl.BlockSpec((blk, 1), lambda i, j, m: (i, 0)),   # per-anchor sum
        ),
        scratch_shapes=[
            pltpu.VMEM((blk, 1), jnp.float32),   # dist_ap + margin cache
            pltpu.VMEM((blk, 1), jnp.float32),   # ||pair1_i||^2 cache
            pltpu.VMEM((blk, 1), jnp.float32),   # running hardest-negative max
            pltpu.VMEM((blk, 1), jnp.float32),   # running off-diag loss sum
        ],
    )

    per_max, per_sum = pl.pallas_call(
        _make_kernel(n, n_pad),
        out_shape=(
            jax.ShapeDtypeStruct((n_pad, 1), jnp.float32),
            jax.ShapeDtypeStruct((n_pad, 1), jnp.float32),
        ),
        grid_spec=grid_spec,
        compiler_params=pltpu.CompilerParams(
            # anchor tiles split across v7x's two TensorCores; j is a reduction
            dimension_semantics=("parallel", "arbitrary"),
            vmem_limit_bytes=32 * 1024 * 1024,
        ),
    )(margin_arr, pair1, pair2, pair1, pair2)

    per_max = per_max[:n, 0]
    per_sum = per_sum[:n, 0]
    sub_loss = jnp.sum(per_max) / jnp.float32(n)
    # NOTE: n == 1 divides by zero (nan), matching the degenerate PyTorch case.
    all_loss = jnp.sum(per_sum) / jnp.float32(2 * n * (n - 1))
    return sub_loss, all_loss


def _reference(pair1, pair2, margin):
    """Pure-JAX reference mirroring the PyTorch double loop."""
    p1 = jnp.asarray(pair1, jnp.float32)
    p2 = jnp.asarray(pair2, jnp.float32)
    n = p1.shape[0]
    dist_ap = jnp.sum((p1 - p2) ** 2, axis=-1)                      # (N,)
    d1 = jnp.sum((p1[:, None, :] - p1[None, :, :]) ** 2, axis=-1)    # (N,N)
    d2 = jnp.sum((p1[:, None, :] - p2[None, :, :]) ** 2, axis=-1)    # (N,N)
    offdiag = ~jnp.eye(n, dtype=bool)
    l1 = jnp.maximum(dist_ap[:, None] - d1 + margin, 0.0)
    l2 = jnp.maximum(dist_ap[:, None] - d2 + margin, 0.0)
    all_loss = (jnp.sum(jnp.where(offdiag, l1, 0.0))
                + jnp.sum(jnp.where(offdiag, l2, 0.0))) / (2 * n * (n - 1))
    m1 = jnp.max(jnp.where(offdiag, l1, -jnp.inf), axis=1)
    m2 = jnp.max(jnp.where(offdiag, l2, -jnp.inf), axis=1)
    sub_loss = jnp.mean(jnp.maximum(jnp.maximum(m1, m2), 0.0))
    return sub_loss, all_loss


if __name__ == "__main__":
    margin = 0.2

    # Shape implied by the module: a small batch of paired embeddings.
    n, dfeat = 8, 32
    k1, k2 = jax.random.split(jax.random.PRNGKey(0))
    p1 = jax.random.normal(k1, (n, dfeat), dtype=jnp.float32)
    p2 = jax.random.normal(k2, (n, dfeat), dtype=jnp.float32)

    sub_loss, all_loss = pair_triplet_loss(p1, p2, margin)
    jax.block_until_ready((sub_loss, all_loss))
    ref_sub, ref_all = _reference(p1, p2, margin)
    assert jnp.allclose(sub_loss, ref_sub, rtol=1e-4, atol=1e-4), (sub_loss, ref_sub)
    assert jnp.allclose(all_loss, ref_all, rtol=1e-4, atol=1e-4), (all_loss, ref_all)

    # Exercise the multi-tile grid path and padded-column masking.
    for n2 in (16, 20):   # 2x2 grid (no padding); 3x3 grid with 4 padded cols
        k3, k4 = jax.random.split(jax.random.PRNGKey(n2))
        q1 = jax.random.normal(k3, (n2, dfeat), dtype=jnp.float32)
        q2 = jax.random.normal(k4, (n2, dfeat), dtype=jnp.float32)
        s2, a2 = pair_triplet_loss(q1, q2, margin, tile=8)
        jax.block_until_ready((s2, a2))
        rs2, ra2 = _reference(q1, q2, margin)
        assert jnp.allclose(s2, rs2, rtol=1e-4, atol=1e-4), (n2, s2, rs2)
        assert jnp.allclose(a2, ra2, rtol=1e-4, atol=1e-4), (n2, a2, ra2)

    print("KERNEL_OK")
</pallas_src>

<mosaic_0001>
module attributes {stable_mosaic.version = 11 : i64} {
  func.func @kernel(%arg0: i32, %arg1: i32, %arg2: memref<1xf32, #tpu.memory_space<smem>>, %arg3: memref<8x32xf32, #tpu.memory_space<vmem>>, %arg4: memref<8x32xf32, #tpu.memory_space<vmem>>, %arg5: memref<8x32xf32, #tpu.memory_space<vmem>>, %arg6: memref<8x32xf32, #tpu.memory_space<vmem>>, %arg7: memref<8x1xf32, #tpu.memory_space<vmem>>, %arg8: memref<8x1xf32, #tpu.memory_space<vmem>>, %arg9: memref<8x1xf32, #tpu.memory_space<vmem>>, %arg10: memref<8x1xf32, #tpu.memory_space<vmem>>, %arg11: memref<8x1xf32, #tpu.memory_space<vmem>>, %arg12: memref<8x1xf32, #tpu.memory_space<vmem>>) attributes {dimension_semantics = [#tpu.dimension_semantics<parallel>, #tpu.dimension_semantics<arbitrary>], iteration_bounds = array<i64: 1, 1>, scalar_prefetch = 1 : i64, scratch_operands = 4 : i64, tpu.core_type = #tpu.core_type<tc>, window_params = [{transform_indices = @transform_0, window_bounds = array<i64: 8, 32>}, {transform_indices = @transform_1, window_bounds = array<i64: 8, 32>}, {transform_indices = @transform_2, window_bounds = array<i64: 8, 32>}, {transform_indices = @transform_3, window_bounds = array<i64: 8, 32>}, {transform_indices = @transform_4, window_bounds = array<i64: 8, 1>}, {transform_indices = @transform_5, window_bounds = array<i64: 8, 1>}]} {
    %c0_i32 = arith.constant 0 : i32
    %0 = arith.cmpi eq, %arg1, %c0_i32 : i32
    %1 = arith.extui %0 : i1 to i32
    %c0_i32_0 = arith.constant 0 : i32
    %2 = arith.cmpi ne, %1, %c0_i32_0 : i32
    scf.if %2 {
      %c0_34 = arith.constant 0 : index
      %c0_35 = arith.constant 0 : index
      %68 = vector.load %arg3[%c0_34, %c0_35] : memref<8x32xf32, #tpu.memory_space<vmem>>, vector<8x32xf32>
      %c0_36 = arith.constant 0 : index
      %c0_37 = arith.constant 0 : index
      %69 = vector.load %arg4[%c0_36, %c0_37] : memref<8x32xf32, #tpu.memory_space<vmem>>, vector<8x32xf32>
      %70 = arith.subf %68, %69 : vector<8x32xf32>
      %71 = arith.mulf %70, %70 : vector<8x32xf32>
      %cst_38 = arith.constant dense<0.000000e+00> : vector<8xf32>
      %72 = vector.multi_reduction <add>, %71, %cst_38 [1] : vector<8x32xf32> to vector<8xf32>
      %73 = vector.shape_cast %72 : vector<8xf32> to vector<8x1xf32>
      %c0_39 = arith.constant 0 : index
      %74 = memref.load %arg2[%c0_39] : memref<1xf32, #tpu.memory_space<smem>>
      %75 = vector.broadcast %74 : f32 to vector<8x1xf32>
      %76 = arith.addf %73, %75 : vector<8x1xf32>
      %c0_40 = arith.constant 0 : index
      %c0_41 = arith.constant 0 : index
      %77 = vector.load %arg9[%c0_40, %c0_41] : memref<8x1xf32, #tpu.memory_space<vmem>>, vector<8x1xf32>
      tpu.vector_store %arg9[%c0_40, %c0_41], %76 {strides = array<i32>} : memref<8x1xf32, #tpu.memory_space<vmem>>, vector<8x1xf32>,
      %78 = arith.mulf %68, %68 : vector<8x32xf32>
      %cst_42 = arith.constant dense<0.000000e+00> : vector<8xf32>
      %79 = vector.multi_reduction <add>, %78, %cst_42 [1] : vector<8x32xf32> to vector<8xf32>
      %80 = vector.shape_cast %79 : vector<8xf32> to vector<8x1xf32>
      %c0_43 = arith.constant 0 : index
      %c0_44 = arith.constant 0 : index
      %81 = vector.load %arg10[%c0_43, %c0_44] : memref<8x1xf32, #tpu.memory_space<vmem>>, vector<8x1xf32>
      tpu.vector_store %arg10[%c0_43, %c0_44], %80 {strides = array<i32>} : memref<8x1xf32, #tpu.memory_space<vmem>>, vector<8x1xf32>,
      %cst_45 = arith.constant 0.000000e+00 : f32
      %82 = vector.broadcast %cst_45 : f32 to vector<8x1xf32>
      %c0_46 = arith.constant 0 : index
      %c0_47 = arith.constant 0 : index
      %83 = vector.load %arg11[%c0_46, %c0_47] : memref<8x1xf32, #tpu.memory_space<vmem>>, vector<8x1xf32>
      tpu.vector_store %arg11[%c0_46, %c0_47], %82 {strides = array<i32>} : memref<8x1xf32, #tpu.memory_space<vmem>>, vector<8x1xf32>,
      %cst_48 = arith.constant 0.000000e+00 : f32
      %84 = vector.broadcast %cst_48 : f32 to vector<8x1xf32>
      %c0_49 = arith.constant 0 : index
      %c0_50 = arith.constant 0 : index
      %85 = vector.load %arg12[%c0_49, %c0_50] : memref<8x1xf32, #tpu.memory_space<vmem>>, vector<8x1xf32>
      tpu.vector_store %arg12[%c0_49, %c0_50], %84 {strides = array<i32>} : memref<8x1xf32, #tpu.memory_space<vmem>>, vector<8x1xf32>,
    } else {
    }
    %c0 = arith.constant 0 : index
    %c0_1 = arith.constant 0 : index
    %3 = vector.load %arg3[%c0, %c0_1] : memref<8x32xf32, #tpu.memory_space<vmem>>, vector<8x32xf32>
    %c0_2 = arith.constant 0 : index
    %c0_3 = arith.constant 0 : index
    %4 = vector.load %arg5[%c0_2, %c0_3] : memref<8x32xf32, #tpu.memory_space<vmem>>, vector<8x32xf32>
    %c0_4 = arith.constant 0 : index
    %c0_5 = arith.constant 0 : index
    %5 = vector.load %arg6[%c0_4, %c0_5] : memref<8x32xf32, #tpu.memory_space<vmem>>, vector<8x32xf32>
    %cst = arith.constant dense<0.000000e+00> : vector<8x8xf32>
    %6 = tpu.matmul %3, %4, %cst {dimension_numbers = #tpu.dot_dimension_numbers<[1], [1], [0], [0], [0, 0, 1, 0], [], []>} : vector<8x32xf32>, vector<8x32xf32>, vector<8x8xf32> -> vector<8x8xf32>
    %cst_6 = arith.constant dense<0.000000e+00> : vector<8x8xf32>
    %7 = tpu.matmul %3, %5, %cst_6 {dimension_numbers = #tpu.dot_dimension_numbers<[1], [1], [0], [0], [0, 0, 1, 0], [], []>} : vector<8x32xf32>, vector<8x32xf32>, vector<8x8xf32> -> vector<8x8xf32>
    %8 = arith.mulf %4, %4 : vector<8x32xf32>
    %cst_7 = arith.constant dense<0.000000e+00> : vector<8xf32>
    %9 = vector.multi_reduction <add>, %8, %cst_7 [1] : vector<8x32xf32> to vector<8xf32>
    %10 = vector.shape_cast %9 : vector<8xf32> to vector<1x8xf32>
    %11 = arith.mulf %5, %5 : vector<8x32xf32>
    %cst_8 = arith.constant dense<0.000000e+00> : vector<8xf32>
    %12 = vector.multi_reduction <add>, %11, %cst_8 [1] : vector<8x32xf32> to vector<8xf32>
    %13 = vector.shape_cast %12 : vector<8xf32> to vector<1x8xf32>
    %c0_9 = arith.constant 0 : index
    %c0_10 = arith.constant 0 : index
    %14 = vector.load %arg10[%c0_9, %c0_10] : memref<8x1xf32, #tpu.memory_space<vmem>>, vector<8x1xf32>
    %c0_11 = arith.constant 0 : index
    %c0_12 = arith.constant 0 : index
    %15 = vector.load %arg9[%c0_11, %c0_12] : memref<8x1xf32, #tpu.memory_space<vmem>>, vector<8x1xf32>
    %16 = vector.broadcast %14 : vector<8x1xf32> to vector<8x8xf32>
    %17 = vector.broadcast %10 : vector<1x8xf32> to vector<8x8xf32>
    %18 = arith.addf %16, %17 : vector<8x8xf32>
    %cst_13 = arith.constant 2.000000e+00 : f32
    %19 = vector.broadcast %cst_13 : f32 to vector<8x8xf32>
    %20 = arith.mulf %19, %6 : vector<8x8xf32>
    %21 = arith.subf %18, %20 : vector<8x8xf32>
    %cst_14 = arith.constant 0.000000e+00 : f32
    %22 = vector.broadcast %cst_14 : f32 to vector<8x8xf32>
    %23 = arith.maximumf %21, %22 : vector<8x8xf32>
    %24 = vector.broadcast %14 : vector<8x1xf32> to vector<8x8xf32>
    %25 = vector.broadcast %13 : vector<1x8xf32> to vector<8x8xf32>
    %26 = arith.addf %24, %25 : vector<8x8xf32>
    %cst_15 = arith.constant 2.000000e+00 : f32
    %27 = vector.broadcast %cst_15 : f32 to vector<8x8xf32>
    %28 = arith.mulf %27, %7 : vector<8x8xf32>
    %29 = arith.subf %26, %28 : vector<8x8xf32>
    %cst_16 = arith.constant 0.000000e+00 : f32
    %30 = vector.broadcast %cst_16 : f32 to vector<8x8xf32>
    %31 = arith.maximumf %29, %30 : vector<8x8xf32>
    %32 = vector.broadcast %15 : vector<8x1xf32> to vector<8x8xf32>
    %33 = arith.subf %32, %23 : vector<8x8xf32>
    %cst_17 = arith.constant 0.000000e+00 : f32
    %34 = vector.broadcast %cst_17 : f32 to vector<8x8xf32>
    %35 = arith.maximumf %33, %34 : vector<8x8xf32>
    %36 = vector.broadcast %15 : vector<8x1xf32> to vector<8x8xf32>
    %37 = arith.subf %36, %31 : vector<8x8xf32>
    %cst_18 = arith.constant 0.000000e+00 : f32
    %38 = vector.broadcast %cst_18 : f32 to vector<8x8xf32>
    %39 = arith.maximumf %37, %38 : vector<8x8xf32>
    %c8_i32 = arith.constant 8 : i32
    %40 = arith.muli %arg0, %c8_i32 : i32
    %41 = tpu.iota {dimensions = array<i32: 0>} : vector<8x8xi32>
    %42 = vector.broadcast %40 : i32 to vector<8x8xi32>
    %43 = arith.addi %42, %41 : vector<8x8xi32>
    %c8_i32_19 = arith.constant 8 : i32
    %44 = arith.muli %arg1, %c8_i32_19 : i32
    %45 = tpu.iota {dimensions = array<i32: 1>} : vector<8x8xi32>
    %46 = vector.broadcast %44 : i32 to vector<8x8xi32>
    %47 = arith.addi %46, %45 : vector<8x8xi32>
    %48 = arith.cmpi ne, %43, %47 : vector<8x8xi32>
    %cst_20 = arith.constant 0.000000e+00 : f32
    %49 = vector.broadcast %cst_20 : f32 to vector<8x8xf32>
    %50 = arith.select %48, %35, %49 : vector<8x8xi1>, vector<8x8xf32>
    %cst_21 = arith.constant 0.000000e+00 : f32
    %51 = vector.broadcast %cst_21 : f32 to vector<8x8xf32>
    %52 = arith.select %48, %39, %51 : vector<8x8xi1>, vector<8x8xf32>
    %53 = arith.maximumf %50, %52 : vector<8x8xf32>
    %cst_22 = arith.constant dense<0xFF800000> : vector<8xf32>
    %54 = vector.multi_reduction <maximumf>, %53, %cst_22 [1] : vector<8x8xf32> to vector<8xf32>
    %55 = vector.shape_cast %54 : vector<8xf32> to vector<8x1xf32>
    %c0_23 = arith.constant 0 : index
    %c0_24 = arith.constant 0 : index
    %56 = vector.load %arg11[%c0_23, %c0_24] : memref<8x1xf32, #tpu.memory_space<vmem>>, vector<8x1xf32>
    %57 = arith.maximumf %56, %55 : vector<8x1xf32>
    %c0_25 = arith.constant 0 : index
    %c0_26 = arith.constant 0 : index
    %58 = vector.load %arg11[%c0_25, %c0_26] : memref<8x1xf32, #tpu.memory_space<vmem>>, vector<8x1xf32>
    tpu.vector_store %arg11[%c0_25, %c0_26], %57 {strides = array<i32>} : memref<8x1xf32, #tpu.memory_space<vmem>>, vector<8x1xf32>,
    %c0_27 = arith.constant 0 : index
    %c0_28 = arith.constant 0 : index
    %59 = vector.load %arg12[%c0_27, %c0_28] : memref<8x1xf32, #tpu.memory_space<vmem>>, vector<8x1xf32>
    %60 = arith.addf %50, %52 : vector<8x8xf32>
    %cst_29 = arith.constant dense<0.000000e+00> : vector<8xf32>
    %61 = vector.multi_reduction <add>, %60, %cst_29 [1] : vector<8x8xf32> to vector<8xf32>
    %62 = vector.shape_cast %61 : vector<8xf32> to vector<8x1xf32>
    %63 = arith.addf %59, %62 : vector<8x1xf32>
    %c0_30 = arith.constant 0 : index
    %c0_31 = arith.constant 0 : index
    %64 = vector.load %arg12[%c0_30, %c0_31] : memref<8x1xf32, #tpu.memory_space<vmem>>, vector<8x1xf32>
    tpu.vector_store %arg12[%c0_30, %c0_31], %63 {strides = array<i32>} : memref<8x1xf32, #tpu.memory_space<vmem>>, vector<8x1xf32>,
    %c0_i32_32 = arith.constant 0 : i32
    %65 = arith.cmpi eq, %arg1, %c0_i32_32 : i32
    %66 = arith.extui %65 : i1 to i32
    %c0_i32_33 = arith.constant 0 : i32
    %67 = arith.cmpi ne, %66, %c0_i32_33 : i32
    scf.if %67 {
      %c0_34 = arith.constant 0 : index
      %c0_35 = arith.constant 0 : index
      %68 = vector.load %arg11[%c0_34, %c0_35] : memref<8x1xf32, #tpu.memory_space<vmem>>, vector<8x1xf32>
      %c0_36 = arith.constant 0 : index
      %c0_37 = arith.constant 0 : index
      %69 = vector.load %arg7[%c0_36, %c0_37] : memref<8x1xf32, #tpu.memory_space<vmem>>, vector<8x1xf32>
      tpu.vector_store %arg7[%c0_36, %c0_37], %68 {strides = array<i32>} : memref<8x1xf32, #tpu.memory_space<vmem>>, vector<8x1xf32>,
      %c0_38 = arith.constant 0 : index
      %c0_39 = arith.constant 0 : index
      %70 = vector.load %arg12[%c0_38, %c0_39] : memref<8x1xf32, #tpu.memory_space<vmem>>, vector<8x1xf32>
      %c0_40 = arith.constant 0 : index
      %c0_41 = arith.constant 0 : index
      %71 = vector.load %arg8[%c0_40, %c0_41] : memref<8x1xf32, #tpu.memory_space<vmem>>, vector<8x1xf32>
      tpu.vector_store %arg8[%c0_40, %c0_41], %70 {strides = array<i32>} : memref<8x1xf32, #tpu.memory_space<vmem>>, vector<8x1xf32>,
    } else {
    }
    return
  }
  func.func @transform_0(%arg0: i32, %arg1: i32, %arg2: memref<1xf32, #tpu.memory_space<smem>>) -> (i32, i32) {
    %c0_i32 = arith.constant 0 : i32
    %c0_i32_0 = arith.constant 0 : i32
    return %arg0, %c0_i32 : i32, i32
  }
  func.func @transform_1(%arg0: i32, %arg1: i32, %arg2: memref<1xf32, #tpu.memory_space<smem>>) -> (i32, i32) {
    %c0_i32 = arith.constant 0 : i32
    %c0_i32_0 = arith.constant 0 : i32
    return %arg0, %c0_i32 : i32, i32
  }
  func.func @transform_2(%arg0: i32, %arg1: i32, %arg2: memref<1xf32, #tpu.memory_space<smem>>) -> (i32, i32) {
    %c0_i32 = arith.constant 0 : i32
    %c0_i32_0 = arith.constant 0 : i32
    return %arg1, %c0_i32 : i32, i32
  }
  func.func @transform_3(%arg0: i32, %arg1: i32, %arg2: memref<1xf32, #tpu.memory_space<smem>>) -> (i32, i32) {
    %c0_i32 = arith.constant 0 : i32
    %c0_i32_0 = arith.constant 0 : i32
    return %arg1, %c0_i32 : i32, i32
  }
  func.func @transform_4(%arg0: i32, %arg1: i32, %arg2: memref<1xf32, #tpu.memory_space<smem>>) -> (i32, i32) {
    %c0_i32 = arith.constant 0 : i32
    %c0_i32_0 = arith.constant 0 : i32
    return %arg0, %c0_i32 : i32, i32
  }
  func.func @transform_5(%arg0: i32, %arg1: i32, %arg2: memref<1xf32, #tpu.memory_space<smem>>) -> (i32, i32) {
    %c0_i32 = arith.constant 0 : i32
    %c0_i32_0 = arith.constant 0 : i32
    return %arg0, %c0_i32 : i32, i32
  }
}

</mosaic_0001>

<llo_original>
// kernel: tpu_custom_call.1
$region0: #{tpu_custom_call.1}
  #allocation0 [shape = 'u32[]', space=smem, size = 0x4, offset = 0x4, fixed_abs, tag = 'smem constant byte address 0x4 - core index']
  #allocation1 [shape = 'u32[144,128]{1,0:T(1,128)}', space=vmem, size = 0x12000, scoped, tag = 'internal scratch']
  #allocation2 [shape = 'f32[8,1]{1,0:T(8,128)}', space=vmem, size = 0x1000, scoped, tag = 'scratch operand']
  #allocation3 [shape = 'f32[8,1]{1,0:T(8,128)}', space=vmem, size = 0x1000, scoped, tag = 'scratch operand']
  #allocation4 [shape = 'f32[8,1]{1,0:T(8,128)}', space=vmem, size = 0x1000, scoped, tag = 'scratch operand']
  #allocation5 [shape = 'f32[8,1]{1,0:T(8,128)}', space=vmem, size = 0x1000, scoped, tag = 'scratch operand']
  #allocation6 [shape = 's32[1]{0}', space=sflag, size = 0x4, scoped, tag = 'scoped memory for tpu_custom_call.1']
  #allocation7 [shape = 'f32[1]{0:T(128)S(6)}', space=smem, size = 0x200, scoped, tag = 'prefetched SMEM operand 0']
  %s0 = inlined_call_operand.<no memory space> [shape: f32[1], index: 0, kind: input, shape index: {}]
  %s1 = inlined_call_operand.hbm [shape: f32[8,32], index: 1, kind: input, shape index: {}]
  %s2 = inlined_call_operand.hbm [shape: f32[8,32], index: 2, kind: input, shape index: {}]
  %s3 = inlined_call_operand.vmem [shape: f32[8,32], index: 3, kind: input, shape index: {}]
  %s4 = inlined_call_operand.hbm [shape: f32[8,32], index: 4, kind: input, shape index: {}]
  %s5 = inlined_call_operand.vmem [shape: f32[8,1], index: 5, kind: output, shape index: {0}]
  %s6 = inlined_call_operand.vmem [shape: f32[8,1], index: 6, kind: output, shape index: {1}]
  %7 = xla_tuple %s5, %s6
  %s8 = sld [smem:[#allocation0]]
  $region54: #{tpu_custom_call.1} parent=0
    _
  %s10 = ssub.s32 1, %s8
  %s11 = scalar_select 0, %s10, %s8
  %12 = sst [smem:[#allocation7]] %s0
  $region1: #{tpu_custom_call.1} parent=0
    #allocation8 [shape = 'u8[4096]{0}', space=vmem, size = 0x1000, scoped, tag = 'input window, operand 1, single buffered']
    #allocation9 [shape = 's32[1]{0}', space=sflag, size = 0x4, scoped, tag = 'scoped memory for tpu_custom_call.1']
    #allocation10 [shape = 'u8[4096]{0}', space=vmem, size = 0x1000, scoped, tag = 'input window, operand 2, single buffered']
    #allocation11 [shape = 's32[1]{0}', space=sflag, size = 0x4, scoped, tag = 'scoped memory for tpu_custom_call.1']
    #allocation12 [shape = 'u8[4096]{0}', space=vmem, size = 0x1000, scoped, tag = 'input window, operand 4, single buffered']
    %13 = vsyncpa [#allocation9], 0
    %14 = vsyncpa [#allocation11], 0
    // Predicated region
    $region2: #{tpu_custom_call.1} parent=1 // pred_check
      _
    $region3: #{tpu_custom_call.1} parent=1 // pred_check_branch
      %16 = sbr.rel (0) target = $region5
    $region4: #{tpu_custom_call.1} parent=1 // pred_region
      %s18 = ssub.s32 128, 128
      %19 = vsyncadd [#allocation9], %s18
      %s21 = sshll.u32 [#allocation8], 4
      %s22 = int_to_ptr.vmem [resolvable:$true] %s21
      %24 = dma.hbm_to_vmem [thread:$0]  %s1, 128, %s22, [#allocation9]
    $region5: #{tpu_custom_call.1} parent=1 // pred_fallthru
      _
    // Predicated region
    $region6: #{tpu_custom_call.1} parent=1 // pred_check
      _
    $region7: #{tpu_custom_call.1} parent=1 // pred_check_branch
      %26 = sbr.rel (0) target = $region9
    $region8: #{tpu_custom_call.1} parent=1 // pred_region
      %s28 = ssub.s32 128, 128
      %29 = vsyncadd [#allocation11], %s28
      %s31 = sshll.u32 [#allocation10], 4
      %s32 = int_to_ptr.vmem [resolvable:$true] %s31
      %34 = dma.hbm_to_vmem [thread:$0]  %s2, 128, %s32, [#allocation11]
    $region9: #{tpu_custom_call.1} parent=1 // pred_fallthru
      _
    // Predicated region
    $region10: #{tpu_custom_call.1} parent=1 // pred_check
      _
    $region11: #{tpu_custom_call.1} parent=1 // pred_check_branch
      %36 = sbr.rel (0) target = $region13
    $region12: #{tpu_custom_call.1} parent=1 // pred_region
      _
    $region13: #{tpu_custom_call.1} parent=1 // pred_fallthru
      _
    // Predicated region
    $region14: #{tpu_custom_call.1} parent=1 // pred_check
      _
    $region15: #{tpu_custom_call.1} parent=1 // pred_check_branch
      %38 = sbr.rel (0) target = $region17
    $region16: #{tpu_custom_call.1} parent=1 // pred_region
      %s40 = ssub.s32 128, 128
      %41 = vsyncadd [#allocation11], %s40
      %s43 = sshll.u32 [#allocation12], 4
      %s44 = int_to_ptr.vmem [resolvable:$true] %s43
      %46 = dma.hbm_to_vmem [thread:$0]  %s4, 128, %s44, [#allocation11]
    $region17: #{tpu_custom_call.1} parent=1 // pred_fallthru
      _
    // Predicated region
    $region18: #{tpu_custom_call.1} parent=1 // pred_check
      _
    $region19: #{tpu_custom_call.1} parent=1 // pred_check_branch
      %48 = sbr.rel (0) target = $region21
    $region20: #{tpu_custom_call.1} parent=1 // pred_region
      %49 = dma.done [#allocation9], 128
    $region21: #{tpu_custom_call.1} parent=1 // pred_fallthru
      _
    // Predicated region
    $region22: #{tpu_custom_call.1} parent=1 // pred_check
      _
    $region23: #{tpu_custom_call.1} parent=1 // pred_check_branch
      %51 = sbr.rel (0) target = $region25
    $region24: #{tpu_custom_call.1} parent=1 // pred_region
      %52 = dma.done [#allocation11], 128
    $region25: #{tpu_custom_call.1} parent=1 // pred_fallthru
      _
    // Predicated region
    $region26: #{tpu_custom_call.1} parent=1 // pred_check
      _
    $region27: #{tpu_custom_call.1} parent=1 // pred_check_branch
      %54 = sbr.rel (0) target = $region29
    $region28: #{tpu_custom_call.1} parent=1 // pred_region
      %55 = dma.done [#allocation11], 128
    $region29: #{tpu_custom_call.1} parent=1 // pred_fallthru
      _
    %p56 = scmp.eq.s32.totalorder 0, 0
    // Predicated region
    $region30: #{tpu_custom_call.1} parent=1 // pred_check
      %p57 = pneg %p56
    $region31: #{tpu_custom_call.1} parent=1 // pred_check_branch
      %59 = sbr.rel (%p57) target = $region33
    $region32: #{tpu_custom_call.1} parent=1 // pred_region
      %v60 = vld [vmem:[#allocation8] sm:$0xff]
      %v61 = vld [vmem:[#allocation10] sm:$0xff]
      %v62 = vsub.f32 %v60, %v61
      %v63 = vmul.f32 %v62, %v62
      %vm64 = vcmask 261120
      %v65 = vsel %vm64, %v63, 0.0
      %66 = vadd.xlane.f32.xlu0 %v65
      %v67 = vpop.xlane.xlu0 %66
      %s68 = sld [smem:[#allocation7]]
      %v69 = vstv %s68
      %v70 = vadd.f32 %v67, %v69
      %vm71 = vcmask 7168
      %72 = vst.msk [vmem:[#allocation2] sm:$0xff] %vm71, %v70
      %v73 = vmul.f32 %v60, %v60
      %v74 = vsel %vm64, %v73, 0.0
      %75 = vadd.xlane.f32.xlu0 %v74
      %v76 = vpop.xlane.xlu0 %75
      %77 = vst.msk [vmem:[#allocation3] sm:$0xff] %vm71, %v76
      %78 = vst.msk [vmem:[#allocation4] sm:$0xff] %vm71, 0.0
      %79 = vst.msk [vmem:[#allocation5] sm:$0xff] %vm71, 0.0
    $region33: #{tpu_custom_call.1} parent=1 // pred_fallthru
      _
    %v80 = vld [vmem:[#allocation8] sm:$0xff]
    %v81 = vld [vmem:[%s3] sm:$0xff]
    %v82 = vld [vmem:[#allocation12] sm:$0xff]
    %vm83 = vcmask 261120
    %v85 = vsel %vm83, %v80, 0
    %v88 = vsel %vm83, %v81, 0
    %90 = vmatprep.subr.mxu0 0.0
    %91 = vmatpush1.xpose.msra.mxu0 %v88
    %92 = vmatprep.subr.mxu0 0.0
    %93 = vmatpush1.xpose.msra.mxu0 0.0
    %94 = vmatprep.subr.mxu0 0.0
    %95 = vmatpush1.xpose.msra.mxu0 0.0
    %96 = vmatprep.subr.mxu0 0.0
    %97 = vmatpush1.xpose.msra.mxu0 0.0
    %98 = vmatprep.subr.mxu0 0.0
    %99 = vmatpush1.xpose.msra.mxu0 0.0
    %100 = vmatprep.subr.mxu0 0.0
    %101 = vmatpush1.xpose.msra.mxu0 0.0
    %102 = vmatprep.subr.mxu0 0.0
    %103 = vmatpush1.xpose.msra.mxu0 0.0
    %104 = vmatprep.subr.mxu0 0.0
    %105 = vmatpush1.xpose.msra.mxu0 0.0
    %106 = vmatprep.subr.mxu0 0.0
    %107 = vmatpush1.xpose.msra.mxu0 0.0
    %108 = vmatprep.subr.mxu0 0.0
    %109 = vmatpush1.xpose.msra.mxu0 0.0
    %110 = vmatprep.subr.mxu0 0.0
    %111 = vmatpush1.xpose.msra.mxu0 0.0
    %112 = vmatprep.subr.mxu0 0.0
    %113 = vmatpush1.xpose.msra.mxu0 0.0
    %114 = vmatprep.subr.mxu0 0.0
    %115 = vmatpush1.xpose.msra.mxu0 0.0
    %116 = vmatprep.subr.mxu0 0.0
    %117 = vmatpush1.xpose.msra.mxu0 0.0
    %118 = vmatprep.subr.mxu0 0.0
    %119 = vmatpush1.xpose.msra.mxu0 0.0
    %120 = vmatprep.subr.mxu0 0.0
    %121 = vmatpush1.xpose.msra.mxu0 0.0
    %122 = vmatprep.subr.mxu0 0.0
    %123 = vmatpush1.xpose.msra.mxu0 0.0
    %124 = vmatprep.subr.mxu0 0.0
    %125 = vmatpush1.xpose.msra.mxu0 0.0
    %126 = vmatprep.subr.mxu0 0.0
    %127 = vmatpush1.xpose.msra.mxu0 0.0
    %128 = vmatprep.subr.mxu0 0.0
    %129 = vmatpush1.xpose.msra.mxu0 0.0
    %130 = vmatprep.subr.mxu0 0.0
    %131 = vmatpush1.xpose.msra.mxu0 0.0
    %132 = vmatprep.subr.mxu0 0.0
    %133 = vmatpush1.xpose.msra.mxu0 0.0
    %134 = vmatprep.subr.mxu0 0.0
    %135 = vmatpush1.xpose.msra.mxu0 0.0
    %136 = vmatprep.subr.mxu0 0.0
    %137 = vmatpush1.xpose.msra.mxu0 0.0
    %138 = vmatprep.subr.mxu0 0.0
    %139 = vmatpush1.xpose.msra.mxu0 0.0
    %140 = vmatprep.subr.mxu0 0.0
    %141 = vmatpush1.xpose.msra.mxu0 0.0
    %142 = vmatprep.subr.mxu0 0.0
    %143 = vmatpush1.xpose.msra.mxu0 0.0
    %144 = vmatprep.subr.mxu0 0.0
    %145 = vmatpush1.xpose.msra.mxu0 0.0
    %146 = vmatprep.subr.mxu0 0.0
    %147 = vmatpush1.xpose.msra.mxu0 0.0
    %148 = vmatprep.subr.mxu0 0.0
    %149 = vmatpush1.xpose.msra.mxu0 0.0
    %150 = vmatprep.subr.mxu0 0.0
    %151 = vmatpush1.xpose.msra.mxu0 0.0
    %152 = vmatprep.subr.mxu0 0.0
    %153 = vmatpush1.xpose.msra.mxu0 0.0
    %154 = vmatprep.mubr.f32.mxu0 0.0
    %155 = vmatmul.mubr.f32.gmra.mrb[0].mxu0 %v85
    %v156 = vpop.f32.mrb[0].mxu0
    %v157 = vadd.f32 0.0, %v156
    %v158 = vpop.f32.mrb[0].mxu0
    %159 = vdwg.mxu0
    %v161 = vsel %vm83, %v82, 0
    %163 = vmatprep.subr.mxu0 0.0
    %164 = vmatpush1.xpose.msra.mxu0 %v161
    %165 = vmatprep.subr.mxu0 0.0
    %166 = vmatpush1.xpose.msra.mxu0 0.0
    %167 = vmatprep.subr.mxu0 0.0
    %168 = vmatpush1.xpose.msra.mxu0 0.0
    %169 = vmatprep.subr.mxu0 0.0
    %170 = vmatpush1.xpose.msra.mxu0 0.0
    %171 = vmatprep.subr.mxu0 0.0
    %172 = vmatpush1.xpose.msra.mxu0 0.0
    %173 = vmatprep.subr.mxu0 0.0
    %174 = vmatpush1.xpose.msra.mxu0 0.0
    %175 = vmatprep.subr.mxu0 0.0
    %176 = vmatpush1.xpose.msra.mxu0 0.0
    %177 = vmatprep.subr.mxu0 0.0
    %178 = vmatpush1.xpose.msra.mxu0 0.0
    %179 = vmatprep.subr.mxu0 0.0
    %180 = vmatpush1.xpose.msra.mxu0 0.0
    %181 = vmatprep.subr.mxu0 0.0
    %182 = vmatpush1.xpose.msra.mxu0 0.0
    %183 = vmatprep.subr.mxu0 0.0
    %184 = vmatpush1.xpose.msra.mxu0 0.0
    %185 = vmatprep.subr.mxu0 0.0
    %186 = vmatpush1.xpose.msra.mxu0 0.0
    %187 = vmatprep.subr.mxu0 0.0
    %188 = vmatpush1.xpose.msra.mxu0 0.0
    %189 = vmatprep.subr.mxu0 0.0
    %190 = vmatpush1.xpose.msra.mxu0 0.0
    %191 = vmatprep.subr.mxu0 0.0
    %192 = vmatpush1.xpose.msra.mxu0 0.0
    %193 = vmatprep.subr.mxu0 0.0
    %194 = vmatpush1.xpose.msra.mxu0 0.0
    %195 = vmatprep.subr.mxu0 0.0
    %196 = vmatpush1.xpose.msra.mxu0 0.0
    %197 = vmatprep.subr.mxu0 0.0
    %198 = vmatpush1.xpose.msra.mxu0 0.0
    %199 = vmatprep.subr.mxu0 0.0
    %200 = vmatpush1.xpose.msra.mxu0 0.0
    %201 = vmatprep.subr.mxu0 0.0
    %202 = vmatpush1.xpose.msra.mxu0 0.0
    %203 = vmatprep.subr.mxu0 0.0
    %204 = vmatpush1.xpose.msra.mxu0 0.0
    %205 = vmatprep.subr.mxu0 0.0
    %206 = vmatpush1.xpose.msra.mxu0 0.0
    %207 = vmatprep.subr.mxu0 0.0
    %208 = vmatpush1.xpose.msra.mxu0 0.0
    %209 = vmatprep.subr.mxu0 0.0
    %210 = vmatpush1.xpose.msra.mxu0 0.0
    %211 = vmatprep.subr.mxu0 0.0
    %212 = vmatpush1.xpose.msra.mxu0 0.0
    %213 = vmatprep.subr.mxu0 0.0
    %214 = vmatpush1.xpose.msra.mxu0 0.0
    %215 = vmatprep.subr.mxu0 0.0
    %216 = vmatpush1.xpose.msra.mxu0 0.0
    %217 = vmatprep.subr.mxu0 0.0
    %218 = vmatpush1.xpose.msra.mxu0 0.0
    %219 = vmatprep.subr.mxu0 0.0
    %220 = vmatpush1.xpose.msra.mxu0 0.0
    %221 = vmatprep.subr.mxu0 0.0
    %222 = vmatpush1.xpose.msra.mxu0 0.0
    %223 = vmatprep.subr.mxu0 0.0
    %224 = vmatpush1.xpose.msra.mxu0 0.0
    %225 = vmatprep.subr.mxu0 0.0
    %226 = vmatpush1.xpose.msra.mxu0 0.0
    %227 = vmatprep.mubr.f32.mxu0 0.0
    %228 = vmatmul.mubr.f32.gmra.mrb[0].mxu0 %v85
    %v229 = vpop.f32.mrb[0].mxu0
    %v230 = vadd.f32 0.0, %v229
    %v231 = vpop.f32.mrb[0].mxu0
    %232 = vdwg.mxu0
    %v233 = vmul.f32 %v81, %v81
    %v234 = vsel %vm83, %v233, 0.0
    %235 = vadd.xlane.f32.xlu0 %v234
    %v236 = vpop.xlane.xlu0 %235
    %v237 = vmul.f32 %v82, %v82
    %v238 = vsel %vm83, %v237, 0.0
    %239 = vadd.xlane.f32.xlu0 %v238
    %v240 = vpop.xlane.xlu0 %239
    %v241 = vld [vmem:[#allocation3] sm:$0xff]
    %v242 = vld [vmem:[#allocation2] sm:$0xff]
    %244 = vset.pattern.permute.xlu0 0
    %245 = vperm.xlu0 %244, %v241
    %v246 = vpop.permute.xlu0 %245
    %v249 = vlaneseq
    %v250 = vand.u32 %v249, 127
    %v251 = vlaneseq
    %v252 = vshrl.u32 %v251, 7
    %v253 = vsub.s32 %v250, %v252
    %v254 = vrot.slane %v236, %v253
    %vm255 = vcmask 1042434
    %v256 = vsel %vm255, %v254, %v254
    %vm257 = vcmask 1043459
    %v258 = vsel %vm257, %v254, %v256
    %vm259 = vcmask 1044484
    %v260 = vsel %vm259, %v254, %v258
    %vm261 = vcmask 1045509
    %v262 = vsel %vm261, %v254, %v260
    %vm263 = vcmask 1046534
    %v264 = vsel %vm263, %v254, %v262
    %vm265 = vcmask 1047559
    %v266 = vsel %vm265, %v254, %v264
    %v268 = vadd.f32 %v246, %v266
    %v269 = vmul.f32 %v157, 2.0
    %v270 = vsub.f32 %v268, %v269
    %v271 = vmax.f32 %v270, 0.0
    %v273 = vlaneseq
    %v274 = vshrl.u32 %v273, 7
    %v275 = vsub.s32 %v250, %v274
    %v276 = vrot.slane %v240, %v275
    %v277 = vsel %vm255, %v276, %v276
    %v278 = vsel %vm257, %v276, %v277
    %v279 = vsel %vm259, %v276, %v278
    %v280 = vsel %vm261, %v276, %v279
    %v281 = vsel %vm263, %v276, %v280
    %v282 = vsel %vm265, %v276, %v281
    %v284 = vadd.f32 %v246, %v282
    %v285 = vmul.f32 %v230, 2.0
    %v286 = vsub.f32 %v284, %v285
    %v287 = vmax.f32 %v286, 0.0
    %289 = vset.pattern.permute.xlu0 0
    %290 = vperm.xlu0 %289, %v242
    %v291 = vpop.permute.xlu0 %290
    %v293 = vsub.f32 %v291, %v271
    %v294 = vmax.f32 %v293, 0.0
    %v295 = vsub.f32 %v291, %v287
    %v296 = vmax.f32 %v295, 0.0
    %s297 = smul.u32 0, 8
    %v298 = vlaneseq
    %v299 = vshrl.u32 %v298, 7
    %v300 = vstv %s297
    %v301 = vadd.s32 %v300, %v299
    %s302 = smul.u32 0, 8
    %v303 = vstv %s302
    %v304 = vadd.s32 %v303, %v250
    %vm305 = vcmp.ne.s32.totalorder %v301, %v304
    %v306 = vsel %vm305, %v294, 0.0
    %v307 = vsel %vm305, %v296, 0.0
    %v308 = vmax.f32 %v306, %v307
    %vm309 = vcmask 64512
    %v310 = vsel %vm309, %v308, -inf
    %311 = vmax.xlane.f32.xlu0 %v310
    %v312 = vpop.xlane.xlu0 %311
    %v313 = vld [vmem:[#allocation4] sm:$0xff]
    %v314 = vmax.f32 %v313, %v312
    %vm315 = vcmask 7168
    %316 = vst.msk [vmem:[#allocation4] sm:$0xff] %vm315, %v314
    %v317 = vld [vmem:[#allocation5] sm:$0xff]
    %v318 = vadd.f32 %v306, %v307
    %v319 = vsel %vm309, %v318, 0.0
    %320 = vadd.xlane.f32.xlu0 %v319
    %v321 = vpop.xlane.xlu0 %320
    %v322 = vadd.f32 %v317, %v321
    %323 = vst.msk [vmem:[#allocation5] sm:$0xff] %vm315, %v322
    // Predicated region
    $region34: #{tpu_custom_call.1} parent=1 // pred_check
      %p324 = pneg %p56
    $region35: #{tpu_custom_call.1} parent=1 // pred_check_branch
      %326 = sbr.rel (%p324) target = $region37
    $region36: #{tpu_custom_call.1} parent=1 // pred_region
      %v327 = vld [vmem:[#allocation4] sm:$0xff]
      %328 = vst.msk [vmem:[%s5] sm:$0xff] %vm315, %v327
      %v329 = vld [vmem:[#allocation5] sm:$0xff]
      %330 = vst.msk [vmem:[%s6] sm:$0xff] %vm315, %v329
    $region37: #{tpu_custom_call.1} parent=1 // pred_fallthru
      _
    // Predicated region
    $region38: #{tpu_custom_call.1} parent=1 // pred_check
      _
    $region39: #{tpu_custom_call.1} parent=1 // pred_check_branch
      %332 = sbr.rel (0) target = $region41
    $region40: #{tpu_custom_call.1} parent=1 // pred_region
      _
    $region41: #{tpu_custom_call.1} parent=1 // pred_fallthru
      _
    // Predicated region
    $region42: #{tpu_custom_call.1} parent=1 // pred_check
      _
    $region43: #{tpu_custom_call.1} parent=1 // pred_check_branch
      %334 = sbr.rel (0) target = $region45
    $region44: #{tpu_custom_call.1} parent=1 // pred_region
      _
    $region45: #{tpu_custom_call.1} parent=1 // pred_fallthru
      _
    // Predicated region
    $region46: #{tpu_custom_call.1} parent=1 // pred_check
      _
    $region47: #{tpu_custom_call.1} parent=1 // pred_check_branch
      %336 = sbr.rel (0) target = $region49
    $region48: #{tpu_custom_call.1} parent=1 // pred_region
      _
    $region49: #{tpu_custom_call.1} parent=1 // pred_fallthru
      _
    // Predicated region
    $region50: #{tpu_custom_call.1} parent=1 // pred_check
      _
    $region51: #{tpu_custom_call.1} parent=1 // pred_check_branch
      %338 = sbr.rel (0) target = $region53
    $region52: #{tpu_custom_call.1} parent=1 // pred_region
      _
    $region53: #{tpu_custom_call.1} parent=1 // pred_fallthru
      _
    %339 = vsyncpa [#allocation9], 1
    %340 = vsyncpa [#allocation11], 1

</llo_original>
